<compile_context>
chip_gen: v5e
topology: v5e:2x2
jax: 0.10.0
libtpu: 0.0.40
codegen_flags: <defaults>
</compile_context>

<pallas_src>
import functools

import jax
import jax.numpy as jnp
from jax.experimental import pallas as pl
from jax.experimental.pallas import tpu as pltpu


def _graph_attention_kernel(x_ref, wqkv_ref, bqkv_ref, wo_ref, bo_ref, o_ref,
                            attn_buf, *, num_heads: int, head_dim: int,
                            compute_dtype):
    Bb, T, E = x_ref.shape
    H, D = num_heads, head_dim

    # ---- Fused QKV projection: one MXU pass with a lane-dense 3E output. ----
    x = x_ref[...].reshape(Bb * T, E).astype(compute_dtype)            # (Bb*T, E)
    qkv = jnp.dot(x, wqkv_ref[...],
                  preferred_element_type=jnp.float32)                  # (Bb*T, 3E) f32
    # Bias add in f32 (q-scaling already folded into W_q / b_q), then ONE cast
    # to the compute dtype; the f32 copy dies immediately.
    qkv3 = (qkv + bqkv_ref[...]).astype(compute_dtype).reshape(Bb, T, 3 * E)

    # ---- Per-head attention.  NOTE: D = E/H should be a multiple of 8 (sublane)
    # and ideally 128 (lane); odd head_dims are still correct but trigger
    # relayout copies on the last-dim slices below. ----
    for h in range(H):
        lo = h * D
        qh = qkv3[:, :, lo:lo + D]                                      # (Bb, T, D) bf16
        kh = qkv3[:, :, E + lo:E + lo + D]                              # (Bb, T, D)
        vh = qkv3[:, :, 2 * E + lo:2 * E + lo + D]                      # (Bb, T, D)

        scores = jnp.einsum("btd,bsd->bts", qh, kh,
                            preferred_element_type=jnp.float32)         # (Bb, T, T) f32
        m = jnp.max(scores, axis=-1, keepdims=True)
        p = jnp.exp(scores - m)
        denom = jnp.sum(p, axis=-1, keepdims=True)                      # (Bb, T, 1)

        pv = jnp.einsum("bts,bsd->btd", p.astype(compute_dtype), vh,
                        preferred_element_type=jnp.float32)             # (Bb, T, D) f32
        # Normalize AFTER the PV matmul: O(T*D) multiplies instead of O(T^2).
        attn_h = pv * pl.reciprocal(denom, approx=True)                 # EUP reciprocal

        # Scatter this head's output into the shared (Bb*T, E) buffer.
        attn_buf[:, lo:lo + D] = attn_h.reshape(Bb * T, D).astype(compute_dtype)

    # ---- Single full-K output projection: fills the MXU (K = E, not head_dim). ----
    out = jnp.dot(attn_buf[...], wo_ref[...],
                  preferred_element_type=jnp.float32) + bo_ref[...]     # (Bb*T, E) f32
    o_ref[...] = out.reshape(Bb, T, E).astype(o_ref.dtype)


# ---------------------------------------------------------------------------
# Generation-aware sizing helpers.
# ---------------------------------------------------------------------------
def _tpu_info():
    try:
        return pltpu.get_tpu_info()
    except Exception:
        return None


def _vmem_capacity_bytes(info):
    cap = getattr(info, "vmem_capacity_bytes", None) if info is not None else None
    if isinstance(cap, int) and cap > 0:
        return cap
    return 128 * 1024 * 1024          # v5e/v6e default; v7x handled via the 75% ceiling


def _num_tensorcores(info):
    if info is not None:
        for attr in ("num_cores", "num_tensorcores", "tensorcores_per_chip",
                     "cores_per_chip"):
            v = getattr(info, attr, None)
            if isinstance(v, int) and v > 0:
                return v
    return 1


def _pick_batch_block(B, T, E, compute_dtype, vmem_cap, n_cores):
    """Largest divisor of B whose per-step activation footprint fits the budget,
    capped so the parallel batch axis can shard across >1 TensorCore (v7x)."""
    itm = jnp.dtype(compute_dtype).itemsize
    per_batch = (T * 3 * E * (4 + itm)      # qkv f32 transient + compute-dtype copy
                 + T * T * (4 + itm)        # one live head's scores/probs
                 + T * E * (itm + 4)        # attn scratch + f32 projected out
                 + T * E * 4 * 4)           # x + o tiles, double-buffered
    budget = max(8 * 1024 * 1024, vmem_cap // 4)
    bb = max(1, min(B, budget // max(per_batch, 1)))
    if n_cores > 1 and B > 1:
        bb = min(bb, max(1, B // n_cores))
    while B % bb:
        bb -= 1
    return int(bb)


def _vmem_limit_bytes(batch_block, T, E, compute_dtype, vmem_cap):
    itm = jnp.dtype(compute_dtype).itemsize
    weights = (E * 3 * E + E * E) * itm               # single-buffered (pl.Buffered(1))
    biases = (3 * E + E) * 4
    io = batch_block * T * E * 4 * 2 * 2              # in + out tiles, double-buffered
    interm = (batch_block * T * 3 * E * (4 + itm)
              + batch_block * T * T * (4 + itm)
              + batch_block * T * E * (itm + 4))
    total = weights + biases + io + interm
    # ~75% of physical VMEM: ~48 MiB on v7x (64 MiB), ~96 MiB on v5e/v6e (128 MiB).
    ceiling = int(vmem_cap * 3 // 4)
    return int(min(max(2 * total, 16 * 1024 * 1024), ceiling))


def prepare_params(params, num_heads, compute_dtype=jnp.bfloat16):
    """Fold scaling into q, fuse QKV weights, cast matmul operands once."""
    E = params["wq_t"].shape[0]
    head_dim = E // num_heads
    scaling = head_dim ** -0.5
    wq_t = params["wq_t"] * scaling
    bq = params["bq"] * scaling
    w_qkv = jnp.concatenate([wq_t, params["wk_t"], params["wv_t"]], axis=1)   # (E, 3E)
    b_qkv = jnp.concatenate([bq, params["bk"], params["bv"]], axis=1)         # (1, 3E)
    return dict(
        w_qkv=w_qkv.astype(compute_dtype),
        b_qkv=b_qkv.astype(jnp.float32),
        w_o=params["wo_t"].astype(compute_dtype),
        b_o=params["bo"].astype(jnp.float32),
    )


def graph_attention_forward(hidden_states, fused_params, num_heads, *,
                            batch_block=None, compute_dtype=jnp.bfloat16):
    """hidden_states: (B, T, E). fused_params: output of prepare_params."""
    B, T, E = hidden_states.shape
    head_dim = E // num_heads
    assert head_dim * num_heads == E

    info = _tpu_info()
    vmem_cap = _vmem_capacity_bytes(info)
    n_cores = _num_tensorcores(info)

    if batch_block is None:
        batch_block = _pick_batch_block(B, T, E, compute_dtype, vmem_cap, n_cores)
    assert B % batch_block == 0

    kernel = functools.partial(
        _graph_attention_kernel,
        num_heads=num_heads, head_dim=head_dim, compute_dtype=compute_dtype)

    w_qkv, b_qkv = fused_params["w_qkv"], fused_params["b_qkv"]
    w_o, b_o = fused_params["w_o"], fused_params["b_o"]
    w_itm = jnp.dtype(compute_dtype).itemsize

    cost = pl.CostEstimate(
        flops=int(2 * B * T * (4 * E * E + 2 * T * E)),
        transcendentals=int(B * num_heads * T * T),
        bytes_accessed=int(2 * B * T * E * hidden_states.dtype.itemsize
                           + (4 * E * E) * w_itm + 4 * E * 4),
    )

    # Loop-invariant weights/biases: constant index_map + single-buffered.
    const_buf = pl.Buffered(1)

    out = pl.pallas_call(
        kernel,
        out_shape=jax.ShapeDtypeStruct((B, T, E), hidden_states.dtype),
        grid_spec=pltpu.PrefetchScalarGridSpec(
            num_scalar_prefetch=0,
            grid=(B // batch_block,),
            in_specs=[
                pl.BlockSpec((batch_block, T, E), lambda b: (b, 0, 0)),   # x
                pl.BlockSpec((E, 3 * E), lambda b: (0, 0),
                             pipeline_mode=const_buf),                    # fused QKV W
                pl.BlockSpec((1, 3 * E), lambda b: (0, 0),
                             pipeline_mode=const_buf),                    # fused QKV b
                pl.BlockSpec((E, E), lambda b: (0, 0),
                             pipeline_mode=const_buf),                    # out_proj W
                pl.BlockSpec((1, E), lambda b: (0, 0),
                             pipeline_mode=const_buf),                    # out_proj b
            ],
            out_specs=pl.BlockSpec((batch_block, T, E), lambda b: (b, 0, 0)),
            scratch_shapes=[
                pltpu.VMEM((batch_block * T, E), compute_dtype),          # head-output buf
            ],
        ),
        compiler_params=pltpu.CompilerParams(
            dimension_semantics=("parallel",),
            vmem_limit_bytes=_vmem_limit_bytes(batch_block, T, E,
                                               compute_dtype, vmem_cap)),
        cost_estimate=cost,
    )(hidden_states, w_qkv, b_qkv, w_o, b_o)

    # Matches the reference return convention for the eval / self-attention path:
    # (attn_output, attn_weights_reshaped=None, past_key_value=None).
    return out, None, None


def _reference_forward(x, params, num_heads):
    """Pure-JAX f32 reference mirroring the PyTorch forward (no mask, no dropout)."""
    B, T, E = x.shape
    D = E // num_heads
    scaling = D ** -0.5
    q = (x @ params["wq_t"] + params["bq"][0]) * scaling
    k = x @ params["wk_t"] + params["bk"][0]
    v = x @ params["wv_t"] + params["bv"][0]

    def shape(t):
        return t.reshape(B, T, num_heads, D).transpose(0, 2, 1, 3)

    qh, kh, vh = shape(q), shape(k), shape(v)
    scores = jnp.einsum("bhtd,bhsd->bhts", qh, kh)
    probs = jax.nn.softmax(scores, axis=-1)
    attn = jnp.einsum("bhts,bhsd->bhtd", probs, vh)
    attn = attn.transpose(0, 2, 1, 3).reshape(B, T, E)
    return attn @ params["wo_t"] + params["bo"][0]


def init_params(key, embed_dim):
    """Deterministic synthetic parameters (torch.nn.Linear shapes, pre-transposed)."""
    keys = jax.random.split(key, 8)
    s = 1.0 / jnp.sqrt(embed_dim)

    def lin(kw, kb):
        w = jax.random.uniform(kw, (embed_dim, embed_dim), jnp.float32, -s, s)
        b = jax.random.uniform(kb, (1, embed_dim), jnp.float32, -s, s)
        return w.T, b  # store transposed: (E_in, E_out)

    wq_t, bq = lin(keys[0], keys[1])
    wk_t, bk = lin(keys[2], keys[3])
    wv_t, bv = lin(keys[4], keys[5])
    wo_t, bo = lin(keys[6], keys[7])
    return dict(wq_t=wq_t, bq=bq, wk_t=wk_t, bk=bk,
                wv_t=wv_t, bv=bv, wo_t=wo_t, bo=bo)


if __name__ == "__main__":
    B, T, E, H = 2, 8, 32, 4   # bsz, tgt_len, embed_dim, num_heads

    key = jax.random.PRNGKey(0)
    k_x, k_p = jax.random.split(key)
    hidden_states = jax.random.normal(k_x, (B, T, E), jnp.float32)
    params = init_params(k_p, E)
    fused_params = prepare_params(params, H)

    out, attn_w, past_kv = graph_attention_forward(hidden_states, fused_params, H)
    out = jax.block_until_ready(out)

    ref = _reference_forward(hidden_states, params, H)
    assert out.shape == (B, T, E)
    # bf16 MXU operands + approx-reciprocal softmax -> looser tolerance than pure f32.
    assert jnp.allclose(out, ref, atol=5e-2, rtol=5e-2), (
        f"mismatch vs reference: max abs diff {jnp.max(jnp.abs(out - ref))}")

    print("KERNEL_OK")
</pallas_src>

<mosaic_0001>
module attributes {stable_mosaic.version = 11 : i64} {
  func.func @_graph_attention_kernel(%arg0: i32, %arg1: memref<2x8x32xf32, #tpu.memory_space<vmem>>, %arg2: memref<32x96xbf16, #tpu.memory_space<vmem>>, %arg3: memref<1x96xf32, #tpu.memory_space<vmem>>, %arg4: memref<32x32xbf16, #tpu.memory_space<vmem>>, %arg5: memref<1x32xf32, #tpu.memory_space<vmem>>, %arg6: memref<2x8x32xf32, #tpu.memory_space<vmem>>, %arg7: memref<16x32xbf16, #tpu.memory_space<vmem>>) attributes {dimension_semantics = [#tpu.dimension_semantics<parallel>], iteration_bounds = array<i64: 1>, scalar_prefetch = 0 : i64, scratch_operands = 1 : i64, tpu.core_type = #tpu.core_type<tc>, window_params = [{transform_indices = @transform_0, window_bounds = array<i64: 2, 8, 32>}, {pipeline_mode = #tpu.pipeline_mode<synchronous>, transform_indices = @transform_1, window_bounds = array<i64: 32, 96>}, {pipeline_mode = #tpu.pipeline_mode<synchronous>, transform_indices = @transform_2, window_bounds = array<i64: 1, 96>}, {pipeline_mode = #tpu.pipeline_mode<synchronous>, transform_indices = @transform_3, window_bounds = array<i64: 32, 32>}, {pipeline_mode = #tpu.pipeline_mode<synchronous>, transform_indices = @transform_4, window_bounds = array<i64: 1, 32>}, {transform_indices = @transform_5, window_bounds = array<i64: 2, 8, 32>}]} {
    %c0 = arith.constant 0 : index
    %c0_0 = arith.constant 0 : index
    %c0_1 = arith.constant 0 : index
    %0 = vector.load %arg1[%c0, %c0_0, %c0_1] : memref<2x8x32xf32, #tpu.memory_space<vmem>>, vector<2x8x32xf32>
    %1 = vector.shape_cast %0 : vector<2x8x32xf32> to vector<16x32xf32>
    %2 = arith.truncf %1 : vector<16x32xf32> to vector<16x32xbf16>
    %c0_2 = arith.constant 0 : index
    %c0_3 = arith.constant 0 : index
    %3 = vector.load %arg2[%c0_2, %c0_3] : memref<32x96xbf16, #tpu.memory_space<vmem>>, vector<32x96xbf16>
    %cst = arith.constant dense<0.000000e+00> : vector<16x96xf32>
    %4 = tpu.matmul %2, %3, %cst {dimension_numbers = #tpu.dot_dimension_numbers<[1], [0], [0], [1], [0, 0, 1, 1], [], []>} : vector<16x32xbf16>, vector<32x96xbf16>, vector<16x96xf32> -> vector<16x96xf32>
    %c0_4 = arith.constant 0 : index
    %c0_5 = arith.constant 0 : index
    %5 = vector.load %arg3[%c0_4, %c0_5] : memref<1x96xf32, #tpu.memory_space<vmem>>, vector<1x96xf32>
    %6 = vector.broadcast %5 : vector<1x96xf32> to vector<16x96xf32>
    %7 = arith.addf %4, %6 : vector<16x96xf32>
    %8 = arith.truncf %7 : vector<16x96xf32> to vector<16x96xbf16>
    %9 = vector.shape_cast %8 : vector<16x96xbf16> to vector<2x8x96xbf16>
    %10 = vector.extract_strided_slice %9 {offsets = [0, 0, 0], sizes = [2, 8, 8], strides = [1, 1, 1]} : vector<2x8x96xbf16> to vector<2x8x8xbf16>
    %11 = vector.extract_strided_slice %9 {offsets = [0, 0, 32], sizes = [2, 8, 8], strides = [1, 1, 1]} : vector<2x8x96xbf16> to vector<2x8x8xbf16>
    %12 = vector.extract_strided_slice %9 {offsets = [0, 0, 64], sizes = [2, 8, 8], strides = [1, 1, 1]} : vector<2x8x96xbf16> to vector<2x8x8xbf16>
    "tpu.trace_start"() <{level = 10 : i32, message = "btd,bsd->bts"}> : () -> ()
    %cst_6 = arith.constant dense<0.000000e+00> : vector<2x8x8xf32>
    %13 = tpu.matmul %10, %11, %cst_6 {dimension_numbers = #tpu.dot_dimension_numbers<[2], [2], [1], [1], [0, 0, 0, 1, 1, 1], [0], [0]>} : vector<2x8x8xbf16>, vector<2x8x8xbf16>, vector<2x8x8xf32> -> vector<2x8x8xf32>
    "tpu.trace_stop"() : () -> ()
    %cst_7 = arith.constant dense<0xFF800000> : vector<2x8xf32>
    %14 = vector.multi_reduction <maximumf>, %13, %cst_7 [2] : vector<2x8x8xf32> to vector<2x8xf32>
    %15 = vector.shape_cast %14 : vector<2x8xf32> to vector<2x8x1xf32>
    %16 = vector.broadcast %15 : vector<2x8x1xf32> to vector<2x8x8xf32>
    %17 = arith.subf %13, %16 : vector<2x8x8xf32>
    %18 = math.exp %17 : vector<2x8x8xf32>
    %cst_8 = arith.constant dense<0.000000e+00> : vector<2x8xf32>
    %19 = vector.multi_reduction <add>, %18, %cst_8 [2] : vector<2x8x8xf32> to vector<2x8xf32>
    %20 = vector.shape_cast %19 : vector<2x8xf32> to vector<2x8x1xf32>
    %21 = arith.truncf %18 : vector<2x8x8xf32> to vector<2x8x8xbf16>
    "tpu.trace_start"() <{level = 10 : i32, message = "bts,bsd->btd"}> : () -> ()
    %cst_9 = arith.constant dense<0.000000e+00> : vector<2x8x8xf32>
    %22 = tpu.matmul %21, %12, %cst_9 {dimension_numbers = #tpu.dot_dimension_numbers<[2], [1], [1], [2], [0, 0, 0, 1, 1, 2], [0], [0]>} : vector<2x8x8xbf16>, vector<2x8x8xbf16>, vector<2x8x8xf32> -> vector<2x8x8xf32>
    "tpu.trace_stop"() : () -> ()
    %23 = tpu.reciprocal %20 {approx = true} : vector<2x8x1xf32> -> vector<2x8x1xf32>
    %24 = vector.broadcast %23 : vector<2x8x1xf32> to vector<2x8x8xf32>
    %25 = arith.mulf %22, %24 : vector<2x8x8xf32>
    %26 = vector.shape_cast %25 : vector<2x8x8xf32> to vector<16x8xf32>
    %27 = arith.truncf %26 : vector<16x8xf32> to vector<16x8xbf16>
    %c0_10 = arith.constant 0 : index
    %c0_11 = arith.constant 0 : index
    %28 = vector.load %arg7[%c0_10, %c0_11] : memref<16x32xbf16, #tpu.memory_space<vmem>>, vector<16x8xbf16>
    tpu.vector_store %arg7[%c0_10, %c0_11], %27 {strides = array<i32>} : memref<16x32xbf16, #tpu.memory_space<vmem>>, vector<16x8xbf16>,
    %29 = vector.extract_strided_slice %9 {offsets = [0, 0, 8], sizes = [2, 8, 8], strides = [1, 1, 1]} : vector<2x8x96xbf16> to vector<2x8x8xbf16>
    %30 = vector.extract_strided_slice %9 {offsets = [0, 0, 40], sizes = [2, 8, 8], strides = [1, 1, 1]} : vector<2x8x96xbf16> to vector<2x8x8xbf16>
    %31 = vector.extract_strided_slice %9 {offsets = [0, 0, 72], sizes = [2, 8, 8], strides = [1, 1, 1]} : vector<2x8x96xbf16> to vector<2x8x8xbf16>
    "tpu.trace_start"() <{level = 10 : i32, message = "btd,bsd->bts"}> : () -> ()
    %cst_12 = arith.constant dense<0.000000e+00> : vector<2x8x8xf32>
    %32 = tpu.matmul %29, %30, %cst_12 {dimension_numbers = #tpu.dot_dimension_numbers<[2], [2], [1], [1], [0, 0, 0, 1, 1, 1], [0], [0]>} : vector<2x8x8xbf16>, vector<2x8x8xbf16>, vector<2x8x8xf32> -> vector<2x8x8xf32>
    "tpu.trace_stop"() : () -> ()
    %cst_13 = arith.constant dense<0xFF800000> : vector<2x8xf32>
    %33 = vector.multi_reduction <maximumf>, %32, %cst_13 [2] : vector<2x8x8xf32> to vector<2x8xf32>
    %34 = vector.shape_cast %33 : vector<2x8xf32> to vector<2x8x1xf32>
    %35 = vector.broadcast %34 : vector<2x8x1xf32> to vector<2x8x8xf32>
    %36 = arith.subf %32, %35 : vector<2x8x8xf32>
    %37 = math.exp %36 : vector<2x8x8xf32>
    %cst_14 = arith.constant dense<0.000000e+00> : vector<2x8xf32>
    %38 = vector.multi_reduction <add>, %37, %cst_14 [2] : vector<2x8x8xf32> to vector<2x8xf32>
    %39 = vector.shape_cast %38 : vector<2x8xf32> to vector<2x8x1xf32>
    %40 = arith.truncf %37 : vector<2x8x8xf32> to vector<2x8x8xbf16>
    "tpu.trace_start"() <{level = 10 : i32, message = "bts,bsd->btd"}> : () -> ()
    %cst_15 = arith.constant dense<0.000000e+00> : vector<2x8x8xf32>
    %41 = tpu.matmul %40, %31, %cst_15 {dimension_numbers = #tpu.dot_dimension_numbers<[2], [1], [1], [2], [0, 0, 0, 1, 1, 2], [0], [0]>} : vector<2x8x8xbf16>, vector<2x8x8xbf16>, vector<2x8x8xf32> -> vector<2x8x8xf32>
    "tpu.trace_stop"() : () -> ()
    %42 = tpu.reciprocal %39 {approx = true} : vector<2x8x1xf32> -> vector<2x8x1xf32>
    %43 = vector.broadcast %42 : vector<2x8x1xf32> to vector<2x8x8xf32>
    %44 = arith.mulf %41, %43 : vector<2x8x8xf32>
    %45 = vector.shape_cast %44 : vector<2x8x8xf32> to vector<16x8xf32>
    %46 = arith.truncf %45 : vector<16x8xf32> to vector<16x8xbf16>
    %c0_16 = arith.constant 0 : index
    %c8 = arith.constant 8 : index
    %47 = vector.load %arg7[%c0_16, %c8] : memref<16x32xbf16, #tpu.memory_space<vmem>>, vector<16x8xbf16>
    tpu.vector_store %arg7[%c0_16, %c8], %46 {strides = array<i32>} : memref<16x32xbf16, #tpu.memory_space<vmem>>, vector<16x8xbf16>,
    %48 = vector.extract_strided_slice %9 {offsets = [0, 0, 16], sizes = [2, 8, 8], strides = [1, 1, 1]} : vector<2x8x96xbf16> to vector<2x8x8xbf16>
    %49 = vector.extract_strided_slice %9 {offsets = [0, 0, 48], sizes = [2, 8, 8], strides = [1, 1, 1]} : vector<2x8x96xbf16> to vector<2x8x8xbf16>
    %50 = vector.extract_strided_slice %9 {offsets = [0, 0, 80], sizes = [2, 8, 8], strides = [1, 1, 1]} : vector<2x8x96xbf16> to vector<2x8x8xbf16>
    "tpu.trace_start"() <{level = 10 : i32, message = "btd,bsd->bts"}> : () -> ()
    %cst_17 = arith.constant dense<0.000000e+00> : vector<2x8x8xf32>
    %51 = tpu.matmul %48, %49, %cst_17 {dimension_numbers = #tpu.dot_dimension_numbers<[2], [2], [1], [1], [0, 0, 0, 1, 1, 1], [0], [0]>} : vector<2x8x8xbf16>, vector<2x8x8xbf16>, vector<2x8x8xf32> -> vector<2x8x8xf32>
    "tpu.trace_stop"() : () -> ()
    %cst_18 = arith.constant dense<0xFF800000> : vector<2x8xf32>
    %52 = vector.multi_reduction <maximumf>, %51, %cst_18 [2] : vector<2x8x8xf32> to vector<2x8xf32>
    %53 = vector.shape_cast %52 : vector<2x8xf32> to vector<2x8x1xf32>
    %54 = vector.broadcast %53 : vector<2x8x1xf32> to vector<2x8x8xf32>
    %55 = arith.subf %51, %54 : vector<2x8x8xf32>
    %56 = math.exp %55 : vector<2x8x8xf32>
    %cst_19 = arith.constant dense<0.000000e+00> : vector<2x8xf32>
    %57 = vector.multi_reduction <add>, %56, %cst_19 [2] : vector<2x8x8xf32> to vector<2x8xf32>
    %58 = vector.shape_cast %57 : vector<2x8xf32> to vector<2x8x1xf32>
    %59 = arith.truncf %56 : vector<2x8x8xf32> to vector<2x8x8xbf16>
    "tpu.trace_start"() <{level = 10 : i32, message = "bts,bsd->btd"}> : () -> ()
    %cst_20 = arith.constant dense<0.000000e+00> : vector<2x8x8xf32>
    %60 = tpu.matmul %59, %50, %cst_20 {dimension_numbers = #tpu.dot_dimension_numbers<[2], [1], [1], [2], [0, 0, 0, 1, 1, 2], [0], [0]>} : vector<2x8x8xbf16>, vector<2x8x8xbf16>, vector<2x8x8xf32> -> vector<2x8x8xf32>
    "tpu.trace_stop"() : () -> ()
    %61 = tpu.reciprocal %58 {approx = true} : vector<2x8x1xf32> -> vector<2x8x1xf32>
    %62 = vector.broadcast %61 : vector<2x8x1xf32> to vector<2x8x8xf32>
    %63 = arith.mulf %60, %62 : vector<2x8x8xf32>
    %64 = vector.shape_cast %63 : vector<2x8x8xf32> to vector<16x8xf32>
    %65 = arith.truncf %64 : vector<16x8xf32> to vector<16x8xbf16>
    %c0_21 = arith.constant 0 : index
    %c16 = arith.constant 16 : index
    %66 = vector.load %arg7[%c0_21, %c16] : memref<16x32xbf16, #tpu.memory_space<vmem>>, vector<16x8xbf16>
    tpu.vector_store %arg7[%c0_21, %c16], %65 {strides = array<i32>} : memref<16x32xbf16, #tpu.memory_space<vmem>>, vector<16x8xbf16>,
    %67 = vector.extract_strided_slice %9 {offsets = [0, 0, 24], sizes = [2, 8, 8], strides = [1, 1, 1]} : vector<2x8x96xbf16> to vector<2x8x8xbf16>
    %68 = vector.extract_strided_slice %9 {offsets = [0, 0, 56], sizes = [2, 8, 8], strides = [1, 1, 1]} : vector<2x8x96xbf16> to vector<2x8x8xbf16>
    %69 = vector.extract_strided_slice %9 {offsets = [0, 0, 88], sizes = [2, 8, 8], strides = [1, 1, 1]} : vector<2x8x96xbf16> to vector<2x8x8xbf16>
    "tpu.trace_start"() <{level = 10 : i32, message = "btd,bsd->bts"}> : () -> ()
    %cst_22 = arith.constant dense<0.000000e+00> : vector<2x8x8xf32>
    %70 = tpu.matmul %67, %68, %cst_22 {dimension_numbers = #tpu.dot_dimension_numbers<[2], [2], [1], [1], [0, 0, 0, 1, 1, 1], [0], [0]>} : vector<2x8x8xbf16>, vector<2x8x8xbf16>, vector<2x8x8xf32> -> vector<2x8x8xf32>
    "tpu.trace_stop"() : () -> ()
    %cst_23 = arith.constant dense<0xFF800000> : vector<2x8xf32>
    %71 = vector.multi_reduction <maximumf>, %70, %cst_23 [2] : vector<2x8x8xf32> to vector<2x8xf32>
    %72 = vector.shape_cast %71 : vector<2x8xf32> to vector<2x8x1xf32>
    %73 = vector.broadcast %72 : vector<2x8x1xf32> to vector<2x8x8xf32>
    %74 = arith.subf %70, %73 : vector<2x8x8xf32>
    %75 = math.exp %74 : vector<2x8x8xf32>
    %cst_24 = arith.constant dense<0.000000e+00> : vector<2x8xf32>
    %76 = vector.multi_reduction <add>, %75, %cst_24 [2] : vector<2x8x8xf32> to vector<2x8xf32>
    %77 = vector.shape_cast %76 : vector<2x8xf32> to vector<2x8x1xf32>
    %78 = arith.truncf %75 : vector<2x8x8xf32> to vector<2x8x8xbf16>
    "tpu.trace_start"() <{level = 10 : i32, message = "bts,bsd->btd"}> : () -> ()
    %cst_25 = arith.constant dense<0.000000e+00> : vector<2x8x8xf32>
    %79 = tpu.matmul %78, %69, %cst_25 {dimension_numbers = #tpu.dot_dimension_numbers<[2], [1], [1], [2], [0, 0, 0, 1, 1, 2], [0], [0]>} : vector<2x8x8xbf16>, vector<2x8x8xbf16>, vector<2x8x8xf32> -> vector<2x8x8xf32>
    "tpu.trace_stop"() : () -> ()
    %80 = tpu.reciprocal %77 {approx = true} : vector<2x8x1xf32> -> vector<2x8x1xf32>
    %81 = vector.broadcast %80 : vector<2x8x1xf32> to vector<2x8x8xf32>
    %82 = arith.mulf %79, %81 : vector<2x8x8xf32>
    %83 = vector.shape_cast %82 : vector<2x8x8xf32> to vector<16x8xf32>
    %84 = arith.truncf %83 : vector<16x8xf32> to vector<16x8xbf16>
    %c0_26 = arith.constant 0 : index
    %c24 = arith.constant 24 : index
    %85 = vector.load %arg7[%c0_26, %c24] : memref<16x32xbf16, #tpu.memory_space<vmem>>, vector<16x8xbf16>
    tpu.vector_store %arg7[%c0_26, %c24], %84 {strides = array<i32>} : memref<16x32xbf16, #tpu.memory_space<vmem>>, vector<16x8xbf16>,
    %c0_27 = arith.constant 0 : index
    %c0_28 = arith.constant 0 : index
    %86 = vector.load %arg7[%c0_27, %c0_28] : memref<16x32xbf16, #tpu.memory_space<vmem>>, vector<16x32xbf16>
    %c0_29 = arith.constant 0 : index
    %c0_30 = arith.constant 0 : index
    %87 = vector.load %arg4[%c0_29, %c0_30] : memref<32x32xbf16, #tpu.memory_space<vmem>>, vector<32x32xbf16>
    %cst_31 = arith.constant dense<0.000000e+00> : vector<16x32xf32>
    %88 = tpu.matmul %86, %87, %cst_31 {dimension_numbers = #tpu.dot_dimension_numbers<[1], [0], [0], [1], [0, 0, 1, 1], [], []>} : vector<16x32xbf16>, vector<32x32xbf16>, vector<16x32xf32> -> vector<16x32xf32>
    %c0_32 = arith.constant 0 : index
    %c0_33 = arith.constant 0 : index
    %89 = vector.load %arg5[%c0_32, %c0_33] : memref<1x32xf32, #tpu.memory_space<vmem>>, vector<1x32xf32>
    %90 = vector.broadcast %89 : vector<1x32xf32> to vector<16x32xf32>
    %91 = arith.addf %88, %90 : vector<16x32xf32>
    %92 = vector.shape_cast %91 : vector<16x32xf32> to vector<2x8x32xf32>
    %c0_34 = arith.constant 0 : index
    %c0_35 = arith.constant 0 : index
    %c0_36 = arith.constant 0 : index
    %93 = vector.load %arg6[%c0_34, %c0_35, %c0_36] : memref<2x8x32xf32, #tpu.memory_space<vmem>>, vector<2x8x32xf32>
    tpu.vector_store %arg6[%c0_34, %c0_35, %c0_36], %92 {strides = array<i32>} : memref<2x8x32xf32, #tpu.memory_space<vmem>>, vector<2x8x32xf32>,
    return
  }
  func.func @transform_0(%arg0: i32) -> (i32, i32, i32) {
    %c0_i32 = arith.constant 0 : i32
    %c0_i32_0 = arith.constant 0 : i32
    %c0_i32_1 = arith.constant 0 : i32
    return %arg0, %c0_i32, %c0_i32_0 : i32, i32, i32
  }
  func.func @transform_1(%arg0: i32) -> (i32, i32) {
    %c0_i32 = arith.constant 0 : i32
    %c0_i32_0 = arith.constant 0 : i32
    %c0_i32_1 = arith.constant 0 : i32
    return %c0_i32, %c0_i32_0 : i32, i32
  }
  func.func @transform_2(%arg0: i32) -> (i32, i32) {
    %c0_i32 = arith.constant 0 : i32
    %c0_i32_0 = arith.constant 0 : i32
    %c0_i32_1 = arith.constant 0 : i32
    return %c0_i32, %c0_i32_0 : i32, i32
  }
  func.func @transform_3(%arg0: i32) -> (i32, i32) {
    %c0_i32 = arith.constant 0 : i32
    %c0_i32_0 = arith.constant 0 : i32
    %c0_i32_1 = arith.constant 0 : i32
    return %c0_i32, %c0_i32_0 : i32, i32
  }
  func.func @transform_4(%arg0: i32) -> (i32, i32) {
    %c0_i32 = arith.constant 0 : i32
    %c0_i32_0 = arith.constant 0 : i32
    %c0_i32_1 = arith.constant 0 : i32
    return %c0_i32, %c0_i32_0 : i32, i32
  }
  func.func @transform_5(%arg0: i32) -> (i32, i32, i32) {
    %c0_i32 = arith.constant 0 : i32
    %c0_i32_0 = arith.constant 0 : i32
    %c0_i32_1 = arith.constant 0 : i32
    return %arg0, %c0_i32, %c0_i32_0 : i32, i32, i32
  }
}

</mosaic_0001>

<llo_original>
// kernel: tpu_custom_call.1
$region0: #{tpu_custom_call.1}
  #allocation0 [shape = 'u32[]', space=smem, size = 0x4, offset = 0x4, fixed_abs, tag = 'smem constant byte address 0x4 - core index']
  #allocation1 [shape = 'u32[72,128]{1,0:T(1,128)}', space=vmem, size = 0x9000, scoped, tag = 'internal scratch']
  #allocation2 [shape = 'bf16[16,32]{1,0:T(8,128)(2,1)}', space=vmem, size = 0x1000, scoped, tag = 'scratch operand']
  %s0 = inlined_call_operand.hbm [shape: f32[2,8,32], index: 0, kind: input, shape index: {}]
  %s1 = inlined_call_operand.hbm [shape: bf16[32,96], index: 1, kind: input, shape index: {}]
  %s2 = inlined_call_operand.vmem [shape: f32[1,96], index: 2, kind: input, shape index: {}]
  %s3 = inlined_call_operand.hbm [shape: bf16[32,32], index: 3, kind: input, shape index: {}]
  %s4 = inlined_call_operand.vmem [shape: f32[1,32], index: 4, kind: input, shape index: {}]
  %s5 = inlined_call_operand.hbm [shape: f32[2,8,32], index: 5, kind: output, shape index: {}]
  %s6 = sld [smem:[#allocation0]]
  $region42: #{tpu_custom_call.1} parent=0
    _
  %s8 = ssub.s32 1, %s6
  %s9 = scalar_select 0, %s8, %s6
  $region1: #{tpu_custom_call.1} parent=0
    #allocation3 [shape = 'u8[8192]{0}', space=vmem, size = 0x2000, scoped, tag = 'input window, operand 0, single buffered']
    #allocation4 [shape = 's32[1]{0}', space=sflag, size = 0x4, scoped, tag = 'scoped memory for tpu_custom_call.1']
    #allocation5 [shape = 's32[1]{0}', space=sflag, size = 0x4, scoped, tag = 'scoped memory for tpu_custom_call.1']
    #allocation6 [shape = 'u8[8192]{0}', space=vmem, size = 0x2000, scoped, tag = 'input window, operand 1, single buffered']
    #allocation7 [shape = 's32[1]{0}', space=sflag, size = 0x4, scoped, tag = 'scoped memory for tpu_custom_call.1']
    #allocation8 [shape = 'u8[8192]{0}', space=vmem, size = 0x2000, scoped, tag = 'input window, operand 3, single buffered']
    #allocation9 [shape = 'u8[8192]{0}', space=vmem, size = 0x2000, scoped, tag = 'output window, operand 0, single buffered']
    %10 = vsyncpa [#allocation4], 0
    %11 = vsyncpa [#allocation7], 0
    %12 = vsyncpa [#allocation5], 0
    // Predicated region
    $region2: #{tpu_custom_call.1} parent=1 // pred_check
      _
    $region3: #{tpu_custom_call.1} parent=1 // pred_check_branch
      %14 = sbr.rel (0) target = $region5
    $region4: #{tpu_custom_call.1} parent=1 // pred_region
      %16 = vsyncadd [#allocation4], 0
      %s17 = sshll.u32 %s0, 4
      %s18 = int_to_ptr.hbm [resolvable:$true] %s17
      %s19 = sshll.u32 [#allocation3], 4
      %s20 = int_to_ptr.vmem [resolvable:$true] %s19
      %25 = dma.hbm_to_vmem [thread:$0]  %s18, 256, %s20, [#allocation4], 128, 128, 8
    $region5: #{tpu_custom_call.1} parent=1 // pred_fallthru
      _
    // Predicated region
    $region6: #{tpu_custom_call.1} parent=1 // pred_check
      _
    $region7: #{tpu_custom_call.1} parent=1 // pred_check_branch
      %27 = sbr.rel (0) target = $region9
    $region8: #{tpu_custom_call.1} parent=1 // pred_region
      %29 = vsyncadd [#allocation7], 0
      %s30 = sshll.u32 %s1, 4
      %s31 = int_to_ptr.hbm [resolvable:$true] %s30
      %s32 = sshll.u32 [#allocation6], 4
      %s33 = int_to_ptr.vmem [resolvable:$true] %s32
      %38 = dma.hbm_to_vmem [thread:$0]  %s31, 256, %s33, [#allocation7], 64, 64, 4
    $region9: #{tpu_custom_call.1} parent=1 // pred_fallthru
      _
    // Predicated region
    $region10: #{tpu_custom_call.1} parent=1 // pred_check
      _
    $region11: #{tpu_custom_call.1} parent=1 // pred_check_branch
      %40 = sbr.rel (0) target = $region13
    $region12: #{tpu_custom_call.1} parent=1 // pred_region
      _
    $region13: #{tpu_custom_call.1} parent=1 // pred_fallthru
      _
    // Predicated region
    $region14: #{tpu_custom_call.1} parent=1 // pred_check
      _
    $region15: #{tpu_custom_call.1} parent=1 // pred_check_branch
      %42 = sbr.rel (0) target = $region17
    $region16: #{tpu_custom_call.1} parent=1 // pred_region
      %44 = vsyncadd [#allocation7], 0
      %s45 = sshll.u32 %s3, 4
      %s46 = int_to_ptr.hbm [resolvable:$true] %s45
      %s47 = sshll.u32 [#allocation8], 4
      %s48 = int_to_ptr.vmem [resolvable:$true] %s47
      %53 = dma.hbm_to_vmem [thread:$0]  %s46, 256, %s48, [#allocation7], 64, 64, 4
    $region17: #{tpu_custom_call.1} parent=1 // pred_fallthru
      _
    // Predicated region
    $region18: #{tpu_custom_call.1} parent=1 // pred_check
      _
    $region19: #{tpu_custom_call.1} parent=1 // pred_check_branch
      %55 = sbr.rel (0) target = $region21
    $region20: #{tpu_custom_call.1} parent=1 // pred_region
      _
    $region21: #{tpu_custom_call.1} parent=1 // pred_fallthru
      _
    // Predicated region
    $region22: #{tpu_custom_call.1} parent=1 // pred_check
      _
    $region23: #{tpu_custom_call.1} parent=1 // pred_check_branch
      %57 = sbr.rel (0) target = $region25
    $region24: #{tpu_custom_call.1} parent=1 // pred_region
      %59 = dma.done [#allocation4], 256
    $region25: #{tpu_custom_call.1} parent=1 // pred_fallthru
      _
    // Predicated region
    $region26: #{tpu_custom_call.1} parent=1 // pred_check
      _
    $region27: #{tpu_custom_call.1} parent=1 // pred_check_branch
      %61 = sbr.rel (0) target = $region29
    $region28: #{tpu_custom_call.1} parent=1 // pred_region
      %63 = dma.done [#allocation7], 256
    $region29: #{tpu_custom_call.1} parent=1 // pred_fallthru
      _
    // Predicated region
    $region30: #{tpu_custom_call.1} parent=1 // pred_check
      _
    $region31: #{tpu_custom_call.1} parent=1 // pred_check_branch
      %65 = sbr.rel (0) target = $region33
    $region32: #{tpu_custom_call.1} parent=1 // pred_region
      %67 = dma.done [#allocation7], 256
    $region33: #{tpu_custom_call.1} parent=1 // pred_fallthru
      _
    %v69 = vld [vmem:[#allocation3] sm:$0xff]
    %v70 = vld [vmem:[#allocation3 + $0x8] sm:$0xff]
    %v71 = vpack.c.bf16 %v70, %v69
    %v72 = vld [vmem:[#allocation6] sm:$0xf]
    %v73 = vld [vmem:[#allocation6 + $0x4] sm:$0xf]
    %v74 = vld [vmem:[#allocation6 + $0x8] sm:$0xf]
    %v75 = vld [vmem:[#allocation6 + $0xc] sm:$0xf]
    %v76 = vld [vmem:[%s2] sm:$0x1]
    %v78 = vperm.slane %v76, 0
    %v84 = vunpack.c.l.b16 %v72
    %v85 = vunpack.c.l.b16 %v73
    %v86 = vunpack.c.l.b16 %v74
    %v87 = vunpack.c.l.b16 %v75
    %v88 = vpack.c.b16 %v85, %v84
    %v89 = vpack.c.b16 %v87, %v86
    %vm92 = vcmask 261120
    %v94 = vsel %vm92, %v71, 0
    %96 = vmatpush.bf16.msra.mxu0 0
    %97 = vmatpush.bf16.msra.mxu0 0
    %98 = vmatpush.bf16.msra.mxu0 0
    %99 = vmatpush.bf16.msra.mxu0 0
    %100 = vmatpush.bf16.msra.mxu0 0
    %101 = vmatpush.bf16.msra.mxu0 0
    %102 = vmatpush.bf16.msra.mxu0 %v89
    %103 = vmatpush.bf16.msra.mxu0 %v88
    %104 = vmatmul.bf16.gmra.mxu0 %v94
    %v105 = vpop.f32.mrf.mxu0
    %v106 = vadd.f32 %v78, %v105
    %v107 = vpop.f32.mrf.mxu0
    %v108 = vadd.f32 %v78, %v107
    %109 = vdwg.mxu0
    %v110 = vpack.c.bf16 %v106, %v106
    %v111 = vpack.c.bf16 %v108, %v108
    %v113 = vunpack.c.l.b16 %v110
    %v114 = vpack.c.b16 %v113, %v113
    %115 = vrot.lane.b32.xlu0 %v114, 96
    %v116 = vpop.permute.xlu0 %115
    %vm117 = vcmask 64512
    %v119 = vsel %vm117, %v110, 0
    %v122 = vsel %vm117, %v116, 0
    %124 = vmatpush.bf16.xpose.msra.mxu0 0
    %125 = vmatpush.bf16.xpose.msra.mxu0 0
    %126 = vmatpush.bf16.xpose.msra.mxu0 0
    %127 = vmatpush.bf16.xpose.msra.mxu0 0
    %128 = vmatpush.bf16.xpose.msra.mxu0 0
    %129 = vmatpush.bf16.xpose.msra.mxu0 0
    %130 = vmatpush.bf16.xpose.msra.mxu0 0
    %131 = vmatpush.bf16.xpose.msra.mxu0 %v122
    %132 = vmatmul.bf16.gmra.mxu0 %v119
    %v133 = vpop.f32.mrf.mxu0
    %v134 = vadd.f32 0.0, %v133
    %v135 = vpop.f32.mrf.mxu0
    %136 = vdwg.mxu0
    %v138 = vunpack.c.l.b16 %v111
    %v139 = vpack.c.b16 %v138, %v138
    %140 = vrot.lane.b32.xlu0 %v139, 96
    %v141 = vpop.permute.xlu0 %140
    %v143 = vsel %vm117, %v111, 0
    %v146 = vsel %vm117, %v141, 0
    %148 = vmatpush.bf16.xpose.msra.mxu0 0
    %149 = vmatpush.bf16.xpose.msra.mxu0 0
    %150 = vmatpush.bf16.xpose.msra.mxu0 0
    %151 = vmatpush.bf16.xpose.msra.mxu0 0
    %152 = vmatpush.bf16.xpose.msra.mxu0 0
    %153 = vmatpush.bf16.xpose.msra.mxu0 0
    %154 = vmatpush.bf16.xpose.msra.mxu0 0
    %155 = vmatpush.bf16.xpose.msra.mxu0 %v146
    %156 = vmatmul.bf16.gmra.mxu0 %v143
    %v157 = vpop.f32.mrf.mxu0
    %v158 = vadd.f32 0.0, %v157
    %v159 = vpop.f32.mrf.mxu0
    %160 = vdwg.mxu0
    %v161 = vsel %vm117, %v134, -inf
    %162 = vmax.xlane.f32.xlu0 %v161
    %v163 = vpop.xlane.xlu0 %162
    %v164 = vsel %vm117, %v158, -inf
    %165 = vmax.xlane.f32.xlu0 %v164
    %v166 = vpop.xlane.xlu0 %165
    %v167 = vsub.f32 %v134, %v163
    %v168 = vsub.f32 %v158, %v166
    %v169 = vmul.f32 %v167, 1.442695
    %v170 = vpow.pop %v169
    %v171 = vmul.f32 %v168, 1.442695
    %v172 = vpow.pop %v171
    %v173 = vsel %vm117, %v170, 0.0
    %174 = vadd.xlane.f32.xlu0 %v173
    %v175 = vpop.xlane.xlu0 %174
    %v176 = vsel %vm117, %v172, 0.0
    %177 = vadd.xlane.f32.xlu0 %v176
    %v178 = vpop.xlane.xlu0 %177
    %v179 = vpack.c.bf16 %v170, %v170
    %v180 = vpack.c.bf16 %v172, %v172
    %181 = vrot.lane.b32.xlu0 %v114, 64
    %v182 = vpop.permute.xlu0 %181
    %v184 = vsel %vm117, %v179, 0
    %vm186 = vcmask 1043456
    %v188 = vsel %vm186, %v182, 0
    %190 = vmatpush.bf16.msra.mxu0 0
    %191 = vmatpush.bf16.msra.mxu0 0
    %192 = vmatpush.bf16.msra.mxu0 0
    %193 = vmatpush.bf16.msra.mxu0 0
    %194 = vmatpush.bf16.msra.mxu0 0
    %195 = vmatpush.bf16.msra.mxu0 0
    %196 = vmatpush.bf16.msra.mxu0 0
    %197 = vmatpush.bf16.msra.mxu0 %v188
    %198 = vmatmul.bf16.gmra.mxu0 %v184
    %v199 = vpop.f32.mrf.mxu0
    %v200 = vadd.f32 0.0, %v199
    %v201 = vpop.f32.mrf.mxu0
    %202 = vdwg.mxu0
    %203 = vrot.lane.b32.xlu0 %v139, 64
    %v204 = vpop.permute.xlu0 %203
    %v206 = vsel %vm117, %v180, 0
    %v209 = vsel %vm186, %v204, 0
    %211 = vmatpush.bf16.msra.mxu0 0
    %212 = vmatpush.bf16.msra.mxu0 0
    %213 = vmatpush.bf16.msra.mxu0 0
    %214 = vmatpush.bf16.msra.mxu0 0
    %215 = vmatpush.bf16.msra.mxu0 0
    %216 = vmatpush.bf16.msra.mxu0 0
    %217 = vmatpush.bf16.msra.mxu0 0
    %218 = vmatpush.bf16.msra.mxu0 %v209
    %219 = vmatmul.bf16.gmra.mxu0 %v206
    %v220 = vpop.f32.mrf.mxu0
    %v221 = vadd.f32 0.0, %v220
    %v222 = vpop.f32.mrf.mxu0
    %223 = vdwg.mxu0
    %v224 = vrcp.pop %v175
    %v225 = vrcp.pop %v178
    %v226 = vmul.f32 %v200, %v224
    %v227 = vmul.f32 %v221, %v225
    %v228 = vpack.c.bf16 %v226, %v226
    %v229 = vpack.c.bf16 %v227, %v227
    %vm230 = vcmask 60416
    %231 = vst.msk [vmem:[#allocation2] sm:$0xf] %vm230, %v228
    %232 = vst.msk [vmem:[#allocation2 + $0x4] sm:$0xf] %vm230, %v229
    %233 = vrot.lane.b32.xlu0 %v114, 120
    %v234 = vpop.permute.xlu0 %233
    %235 = vrot.lane.b32.xlu0 %v114, 88
    %v236 = vpop.permute.xlu0 %235
    %v238 = vsel %vm117, %v234, 0
    %v241 = vsel %vm117, %v236, 0
    %243 = vmatpush.bf16.xpose.msra.mxu0 0
    %244 = vmatpush.bf16.xpose.msra.mxu0 0
    %245 = vmatpush.bf16.xpose.msra.mxu0 0
    %246 = vmatpush.bf16.xpose.msra.mxu0 0
    %247 = vmatpush.bf16.xpose.msra.mxu0 0
    %248 = vmatpush.bf16.xpose.msra.mxu0 0
    %249 = vmatpush.bf16.xpose.msra.mxu0 0
    %250 = vmatpush.bf16.xpose.msra.mxu0 %v241
    %251 = vmatmul.bf16.gmra.mxu0 %v238
    %v252 = vpop.f32.mrf.mxu0
    %v253 = vadd.f32 0.0, %v252
    %v254 = vpop.f32.mrf.mxu0
    %255 = vdwg.mxu0
    %256 = vrot.lane.b32.xlu0 %v139, 120
    %v257 = vpop.permute.xlu0 %256
    %258 = vrot.lane.b32.xlu0 %v139, 88
    %v259 = vpop.permute.xlu0 %258
    %v261 = vsel %vm117, %v257, 0
    %v264 = vsel %vm117, %v259, 0
    %266 = vmatpush.bf16.xpose.msra.mxu0 0
    %267 = vmatpush.bf16.xpose.msra.mxu0 0
    %268 = vmatpush.bf16.xpose.msra.mxu0 0
    %269 = vmatpush.bf16.xpose.msra.mxu0 0
    %270 = vmatpush.bf16.xpose.msra.mxu0 0
    %271 = vmatpush.bf16.xpose.msra.mxu0 0
    %272 = vmatpush.bf16.xpose.msra.mxu0 0
    %273 = vmatpush.bf16.xpose.msra.mxu0 %v264
    %274 = vmatmul.bf16.gmra.mxu0 %v261
    %v275 = vpop.f32.mrf.mxu0
    %v276 = vadd.f32 0.0, %v275
    %v277 = vpop.f32.mrf.mxu0
    %278 = vdwg.mxu0
    %v279 = vsel %vm117, %v253, -inf
    %280 = vmax.xlane.f32.xlu0 %v279
    %v281 = vpop.xlane.xlu0 %280
    %v282 = vsel %vm117, %v276, -inf
    %283 = vmax.xlane.f32.xlu0 %v282
    %v284 = vpop.xlane.xlu0 %283
    %v285 = vsub.f32 %v253, %v281
    %v286 = vsub.f32 %v276, %v284
    %v287 = vmul.f32 %v285, 1.442695
    %v288 = vpow.pop %v287
    %v289 = vmul.f32 %v286, 1.442695
    %v290 = vpow.pop %v289
    %v291 = vsel %vm117, %v288, 0.0
    %292 = vadd.xlane.f32.xlu0 %v291
    %v293 = vpop.xlane.xlu0 %292
    %v294 = vsel %vm117, %v290, 0.0
    %295 = vadd.xlane.f32.xlu0 %v294
    %v296 = vpop.xlane.xlu0 %295
    %v297 = vpack.c.bf16 %v288, %v288
    %v298 = vpack.c.bf16 %v290, %v290
    %299 = vrot.lane.b32.xlu0 %v114, 56
    %v300 = vpop.permute.xlu0 %299
    %v302 = vsel %vm117, %v297, 0
    %v305 = vsel %vm186, %v300, 0
    %307 = vmatpush.bf16.msra.mxu0 0
    %308 = vmatpush.bf16.msra.mxu0 0
    %309 = vmatpush.bf16.msra.mxu0 0
    %310 = vmatpush.bf16.msra.mxu0 0
    %311 = vmatpush.bf16.msra.mxu0 0
    %312 = vmatpush.bf16.msra.mxu0 0
    %313 = vmatpush.bf16.msra.mxu0 0
    %314 = vmatpush.bf16.msra.mxu0 %v305
    %315 = vmatmul.bf16.gmra.mxu0 %v302
    %v316 = vpop.f32.mrf.mxu0
    %v317 = vadd.f32 0.0, %v316
    %v318 = vpop.f32.mrf.mxu0
    %319 = vdwg.mxu0
    %320 = vrot.lane.b32.xlu0 %v139, 56
    %v321 = vpop.permute.xlu0 %320
    %v323 = vsel %vm117, %v298, 0
    %v326 = vsel %vm186, %v321, 0
    %328 = vmatpush.bf16.msra.mxu0 0
    %329 = vmatpush.bf16.msra.mxu0 0
    %330 = vmatpush.bf16.msra.mxu0 0
    %331 = vmatpush.bf16.msra.mxu0 0
    %332 = vmatpush.bf16.msra.mxu0 0
    %333 = vmatpush.bf16.msra.mxu0 0
    %334 = vmatpush.bf16.msra.mxu0 0
    %335 = vmatpush.bf16.msra.mxu0 %v326
    %336 = vmatmul.bf16.gmra.mxu0 %v323
    %v337 = vpop.f32.mrf.mxu0
    %v338 = vadd.f32 0.0, %v337
    %v339 = vpop.f32.mrf.mxu0
    %340 = vdwg.mxu0
    %v341 = vrcp.pop %v293
    %v342 = vrcp.pop %v296
    %v343 = vmul.f32 %v317, %v341
    %v344 = vmul.f32 %v338, %v342
    %v345 = vpack.c.bf16 %v343, %v343
    %v346 = vpack.c.bf16 %v344, %v344
    %349 = vrot.lane.b32.xlu0 %v345, 8
    %v350 = vpop.permute.xlu0 %349
    %351 = vrot.lane.b32.xlu0 %v346, 8
    %v352 = vpop.permute.xlu0 %351
    %vm355 = vcmask 126016
    %356 = vst.msk [vmem:[#allocation2] sm:$0xf] %vm355, %v350
    %357 = vst.msk [vmem:[#allocation2 + $0x4] sm:$0xf] %vm355, %v352
    %358 = vrot.lane.b32.xlu0 %v114, 112
    %v359 = vpop.permute.xlu0 %358
    %360 = vrot.lane.b32.xlu0 %v114, 80
    %v361 = vpop.permute.xlu0 %360
    %v363 = vsel %vm117, %v359, 0
    %v366 = vsel %vm117, %v361, 0
    %368 = vmatpush.bf16.xpose.msra.mxu0 0
    %369 = vmatpush.bf16.xpose.msra.mxu0 0
    %370 = vmatpush.bf16.xpose.msra.mxu0 0
    %371 = vmatpush.bf16.xpose.msra.mxu0 0
    %372 = vmatpush.bf16.xpose.msra.mxu0 0
    %373 = vmatpush.bf16.xpose.msra.mxu0 0
    %374 = vmatpush.bf16.xpose.msra.mxu0 0
    %375 = vmatpush.bf16.xpose.msra.mxu0 %v366
    %376 = vmatmul.bf16.gmra.mxu0 %v363
    %v377 = vpop.f32.mrf.mxu0
    %v378 = vadd.f32 0.0, %v377
    %v379 = vpop.f32.mrf.mxu0
    %380 = vdwg.mxu0
    %381 = vrot.lane.b32.xlu0 %v139, 112
    %v382 = vpop.permute.xlu0 %381
    %383 = vrot.lane.b32.xlu0 %v139, 80
    %v384 = vpop.permute.xlu0 %383
    %v386 = vsel %vm117, %v382, 0
    %v389 = vsel %vm117, %v384, 0
    %391 = vmatpush.bf16.xpose.msra.mxu0 0
    %392 = vmatpush.bf16.xpose.msra.mxu0 0
    %393 = vmatpush.bf16.xpose.msra.mxu0 0
    %394 = vmatpush.bf16.xpose.msra.mxu0 0
    %395 = vmatpush.bf16.xpose.msra.mxu0 0
    %396 = vmatpush.bf16.xpose.msra.mxu0 0
    %397 = vmatpush.bf16.xpose.msra.mxu0 0
    %398 = vmatpush.bf16.xpose.msra.mxu0 %v389
    %399 = vmatmul.bf16.gmra.mxu0 %v386
    %v400 = vpop.f32.mrf.mxu0
    %v401 = vadd.f32 0.0, %v400
    %v402 = vpop.f32.mrf.mxu0
    %403 = vdwg.mxu0
    %v404 = vsel %vm117, %v378, -inf
    %405 = vmax.xlane.f32.xlu0 %v404
    %v406 = vpop.xlane.xlu0 %405
    %v407 = vsel %vm117, %v401, -inf
    %408 = vmax.xlane.f32.xlu0 %v407
    %v409 = vpop.xlane.xlu0 %408
    %v410 = vsub.f32 %v378, %v406
    %v411 = vsub.f32 %v401, %v409
    %v412 = vmul.f32 %v410, 1.442695
    %v413 = vpow.pop %v412
    %v414 = vmul.f32 %v411, 1.442695
    %v415 = vpow.pop %v414
    %v416 = vsel %vm117, %v413, 0.0
    %417 = vadd.xlane.f32.xlu0 %v416
    %v418 = vpop.xlane.xlu0 %417
    %v419 = vsel %vm117, %v415, 0.0
    %420 = vadd.xlane.f32.xlu0 %v419
    %v421 = vpop.xlane.xlu0 %420
    %v422 = vpack.c.bf16 %v413, %v413
    %v423 = vpack.c.bf16 %v415, %v415
    %424 = vrot.lane.b32.xlu0 %v114, 48
    %v425 = vpop.permute.xlu0 %424
    %v427 = vsel %vm117, %v422, 0
    %v430 = vsel %vm186, %v425, 0
    %432 = vmatpush.bf16.msra.mxu0 0
    %433 = vmatpush.bf16.msra.mxu0 0
    %434 = vmatpush.bf16.msra.mxu0 0
    %435 = vmatpush.bf16.msra.mxu0 0
    %436 = vmatpush.bf16.msra.mxu0 0
    %437 = vmatpush.bf16.msra.mxu0 0
    %438 = vmatpush.bf16.msra.mxu0 0
    %439 = vmatpush.bf16.msra.mxu0 %v430
    %440 = vmatmul.bf16.gmra.mxu0 %v427
    %v441 = vpop.f32.mrf.mxu0
    %v442 = vadd.f32 0.0, %v441
    %v443 = vpop.f32.mrf.mxu0
    %444 = vdwg.mxu0
    %445 = vrot.lane.b32.xlu0 %v139, 48
    %v446 = vpop.permute.xlu0 %445
    %v448 = vsel %vm117, %v423, 0
    %v451 = vsel %vm186, %v446, 0
    %453 = vmatpush.bf16.msra.mxu0 0
    %454 = vmatpush.bf16.msra.mxu0 0
    %455 = vmatpush.bf16.msra.mxu0 0
    %456 = vmatpush.bf16.msra.mxu0 0
    %457 = vmatpush.bf16.msra.mxu0 0
    %458 = vmatpush.bf16.msra.mxu0 0
    %459 = vmatpush.bf16.msra.mxu0 0
    %460 = vmatpush.bf16.msra.mxu0 %v451
    %461 = vmatmul.bf16.gmra.mxu0 %v448
    %v462 = vpop.f32.mrf.mxu0
    %v463 = vadd.f32 0.0, %v462
    %v464 = vpop.f32.mrf.mxu0
    %465 = vdwg.mxu0
    %v466 = vrcp.pop %v418
    %v467 = vrcp.pop %v421
    %v468 = vmul.f32 %v442, %v466
    %v469 = vmul.f32 %v463, %v467
    %v470 = vpack.c.bf16 %v468, %v468
    %v471 = vpack.c.bf16 %v469, %v469
    %474 = vrot.lane.b32.xlu0 %v470, 16
    %v475 = vpop.permute.xlu0 %474
    %476 = vrot.lane.b32.xlu0 %v471, 16
    %v477 = vpop.permute.xlu0 %476
    %vm480 = vcmask 191616
    %481 = vst.msk [vmem:[#allocation2] sm:$0xf] %vm480, %v475
    %482 = vst.msk [vmem:[#allocation2 + $0x4] sm:$0xf] %vm480, %v477
    %483 = vrot.lane.b32.xlu0 %v114, 104
    %v484 = vpop.permute.xlu0 %483
    %485 = vrot.lane.b32.xlu0 %v114, 72
    %v486 = vpop.permute.xlu0 %485
    %v488 = vsel %vm117, %v484, 0
    %v491 = vsel %vm117, %v486, 0
    %493 = vmatpush.bf16.xpose.msra.mxu0 0
    %494 = vmatpush.bf16.xpose.msra.mxu0 0
    %495 = vmatpush.bf16.xpose.msra.mxu0 0
    %496 = vmatpush.bf16.xpose.msra.mxu0 0
    %497 = vmatpush.bf16.xpose.msra.mxu0 0
    %498 = vmatpush.bf16.xpose.msra.mxu0 0
    %499 = vmatpush.bf16.xpose.msra.mxu0 0
    %500 = vmatpush.bf16.xpose.msra.mxu0 %v491
    %501 = vmatmul.bf16.gmra.mxu0 %v488
    %v502 = vpop.f32.mrf.mxu0
    %v503 = vadd.f32 0.0, %v502
    %v504 = vpop.f32.mrf.mxu0
    %505 = vdwg.mxu0
    %506 = vrot.lane.b32.xlu0 %v139, 104
    %v507 = vpop.permute.xlu0 %506
    %508 = vrot.lane.b32.xlu0 %v139, 72
    %v509 = vpop.permute.xlu0 %508
    %v511 = vsel %vm117, %v507, 0
    %v514 = vsel %vm117, %v509, 0
    %516 = vmatpush.bf16.xpose.msra.mxu0 0
    %517 = vmatpush.bf16.xpose.msra.mxu0 0
    %518 = vmatpush.bf16.xpose.msra.mxu0 0
    %519 = vmatpush.bf16.xpose.msra.mxu0 0
    %520 = vmatpush.bf16.xpose.msra.mxu0 0
    %521 = vmatpush.bf16.xpose.msra.mxu0 0
    %522 = vmatpush.bf16.xpose.msra.mxu0 0
    %523 = vmatpush.bf16.xpose.msra.mxu0 %v514
    %524 = vmatmul.bf16.gmra.mxu0 %v511
    %v525 = vpop.f32.mrf.mxu0
    %v526 = vadd.f32 0.0, %v525
    %v527 = vpop.f32.mrf.mxu0
    %528 = vdwg.mxu0
    %v529 = vsel %vm117, %v503, -inf
    %530 = vmax.xlane.f32.xlu0 %v529
    %v531 = vpop.xlane.xlu0 %530
    %v532 = vsel %vm117, %v526, -inf
    %533 = vmax.xlane.f32.xlu0 %v532
    %v534 = vpop.xlane.xlu0 %533
    %v535 = vsub.f32 %v503, %v531
    %v536 = vsub.f32 %v526, %v534
    %v537 = vmul.f32 %v535, 1.442695
    %v538 = vpow.pop %v537
    %v539 = vmul.f32 %v536, 1.442695
    %v540 = vpow.pop %v539
    %v541 = vsel %vm117, %v538, 0.0
    %542 = vadd.xlane.f32.xlu0 %v541
    %v543 = vpop.xlane.xlu0 %542
    %v544 = vsel %vm117, %v540, 0.0
    %545 = vadd.xlane.f32.xlu0 %v544
    %v546 = vpop.xlane.xlu0 %545
    %v547 = vpack.c.bf16 %v538, %v538
    %v548 = vpack.c.bf16 %v540, %v540
    %549 = vrot.lane.b32.xlu0 %v114, 40
    %v550 = vpop.permute.xlu0 %549
    %v552 = vsel %vm117, %v547, 0
    %v555 = vsel %vm186, %v550, 0
    %557 = vmatpush.bf16.msra.mxu0 0
    %558 = vmatpush.bf16.msra.mxu0 0
    %559 = vmatpush.bf16.msra.mxu0 0
    %560 = vmatpush.bf16.msra.mxu0 0
    %561 = vmatpush.bf16.msra.mxu0 0
    %562 = vmatpush.bf16.msra.mxu0 0
    %563 = vmatpush.bf16.msra.mxu0 0
    %564 = vmatpush.bf16.msra.mxu0 %v555
    %565 = vmatmul.bf16.gmra.mxu0 %v552
    %v566 = vpop.f32.mrf.mxu0
    %v567 = vadd.f32 0.0, %v566
    %v568 = vpop.f32.mrf.mxu0
    %569 = vdwg.mxu0
    %570 = vrot.lane.b32.xlu0 %v139, 40
    %v571 = vpop.permute.xlu0 %570
    %v573 = vsel %vm117, %v548, 0
    %v576 = vsel %vm186, %v571, 0
    %578 = vmatpush.bf16.msra.mxu0 0
    %579 = vmatpush.bf16.msra.mxu0 0
    %580 = vmatpush.bf16.msra.mxu0 0
    %581 = vmatpush.bf16.msra.mxu0 0
    %582 = vmatpush.bf16.msra.mxu0 0
    %583 = vmatpush.bf16.msra.mxu0 0
    %584 = vmatpush.bf16.msra.mxu0 0
    %585 = vmatpush.bf16.msra.mxu0 %v576
    %586 = vmatmul.bf16.gmra.mxu0 %v573
    %v587 = vpop.f32.mrf.mxu0
    %v588 = vadd.f32 0.0, %v587
    %v589 = vpop.f32.mrf.mxu0
    %590 = vdwg.mxu0
    %v591 = vrcp.pop %v543
    %v592 = vrcp.pop %v546
    %v593 = vmul.f32 %v567, %v591
    %v594 = vmul.f32 %v588, %v592
    %v595 = vpack.c.bf16 %v593, %v593
    %v596 = vpack.c.bf16 %v594, %v594
    %599 = vrot.lane.b32.xlu0 %v595, 24
    %v600 = vpop.permute.xlu0 %599
    %601 = vrot.lane.b32.xlu0 %v596, 24
    %v602 = vpop.permute.xlu0 %601
    %vm605 = vcmask 257216
    %606 = vst.msk [vmem:[#allocation2] sm:$0xf] %vm605, %v600
    %607 = vst.msk [vmem:[#allocation2 + $0x4] sm:$0xf] %vm605, %v602
    %v608 = vld [vmem:[#allocation2] sm:$0xf]
    %v609 = vld [vmem:[#allocation2 + $0x4] sm:$0xf]
    %v610 = vld [vmem:[#allocation8] sm:$0xf]
    %v611 = vld [vmem:[#allocation8 + $0x4] sm:$0xf]
    %v612 = vld [vmem:[#allocation8 + $0x8] sm:$0xf]
    %v613 = vld [vmem:[#allocation8 + $0xc] sm:$0xf]
    %v614 = vld [vmem:[%s4] sm:$0x1]
    %v616 = vperm.slane %v614, 0
    %v620 = vunpack.c.l.b16 %v608
    %v621 = vunpack.c.l.b16 %v609
    %v622 = vpack.c.b16 %v621, %v620
    %v627 = vunpack.c.l.b16 %v610
    %v628 = vunpack.c.l.b16 %v611
    %v629 = vunpack.c.l.b16 %v612
    %v630 = vunpack.c.l.b16 %v613
    %v631 = vpack.c.b16 %v628, %v627
    %v632 = vpack.c.b16 %v630, %v629
    %v636 = vsel %vm92, %v622, 0
    %638 = vmatpush.bf16.msra.mxu0 0
    %639 = vmatpush.bf16.msra.mxu0 0
    %640 = vmatpush.bf16.msra.mxu0 0
    %641 = vmatpush.bf16.msra.mxu0 0
    %642 = vmatpush.bf16.msra.mxu0 0
    %643 = vmatpush.bf16.msra.mxu0 0
    %644 = vmatpush.bf16.msra.mxu0 %v632
    %645 = vmatpush.bf16.msra.mxu0 %v631
    %646 = vmatmul.bf16.gmra.mxu0 %v636
    %v647 = vpop.f32.mrf.mxu0
    %v648 = vadd.f32 %v616, %v647
    %v649 = vpop.f32.mrf.mxu0
    %v650 = vadd.f32 %v616, %v649
    %651 = vdwg.mxu0
    %652 = vst.msk [vmem:[#allocation9] sm:$0xff] %vm92, %v648
    %653 = vst.msk [vmem:[#allocation9 + $0x8] sm:$0xff] %vm92, %v650
    // Predicated region
    $region34: #{tpu_custom_call.1} parent=1 // pred_check
      _
    $region35: #{tpu_custom_call.1} parent=1 // pred_check_branch
      %655 = sbr.rel (0) target = $region37
    $region36: #{tpu_custom_call.1} parent=1 // pred_region
      %657 = vsyncadd [#allocation5], 0
      %s658 = sshll.u32 [#allocation9], 4
      %s659 = int_to_ptr.vmem [resolvable:$true] %s658
      %s660 = sshll.u32 %s5, 4
      %s661 = int_to_ptr.hbm [resolvable:$true] %s660
      %666 = dma.vmem_to_hbm [thread:$0]  %s659, 256, %s661, [#allocation5], 128, 128, 8
    $region37: #{tpu_custom_call.1} parent=1 // pred_fallthru
      _
    // Predicated region
    $region38: #{tpu_custom_call.1} parent=1 // pred_check
      _
    $region39: #{tpu_custom_call.1} parent=1 // pred_check_branch
      %668 = sbr.rel (0) target = $region41
    $region40: #{tpu_custom_call.1} parent=1 // pred_region
      %670 = dma.done [#allocation5], 256
    $region41: #{tpu_custom_call.1} parent=1 // pred_fallthru
      _
    %671 = vsyncpa [#allocation4], 1
    %672 = vsyncpa [#allocation7], 1
    %673 = vsyncpa [#allocation5], 1

</llo_original>
